<compile_context>
chip_gen: v5e
topology: v5e:2x2
jax: 0.10.0
libtpu: 0.0.40
codegen_flags: <defaults>
</compile_context>

<pallas_src>
import jax
import jax.numpy as jnp
from jax import lax
from jax.experimental import pallas as pl
from jax.experimental.pallas import tpu as pltpu

_MIB = 1024 * 1024
_STRIP = 512  # in-kernel lane strip (multiple of 128; keeps acc to a few vregs)


def _vmem_budget_bytes():
    """Generation-aware scoped-VMEM budget (headroom left for Mosaic scratch)."""
    try:
        cap = int(pltpu.get_tpu_info().vmem_capacity_bytes)
    except Exception:
        cap = 64 * _MIB  # v7x floor: 64 MiB per TensorCore
    # v7x (64 MiB phys) -> 48 MiB; v5e/v6e (128 MiB phys) -> 100 MiB.
    return max(32 * _MIB, min(cap - 16 * _MIB, 100 * _MIB))


def _make_kernel(c_in, c_out, tile_l, use_mxu):
    strip = min(_STRIP, tile_l)
    n_full = tile_l // strip
    rem = tile_l - n_full * strip

    def compute_strip(x_ref, w, b, o_ref, lo, width):
        lanes = pl.ds(lo, width)
        if use_mxu:
            xs = x_ref[:, lanes].astype(jnp.float32)              # (C_in, width)
            acc = jnp.dot(w, xs, preferred_element_type=jnp.float32,
                          precision=lax.Precision.HIGHEST)        # (C_out, width)
        else:
            # Tiny contraction: unrolled VPU MACs; per-channel rows are read
            # straight from the ref (no full-tile materialization in vregs).
            acc = w[:, 0:1] * x_ref[pl.ds(0, 1), lanes].astype(jnp.float32)
            for ci in range(1, c_in):
                acc = acc + w[:, ci:ci + 1] * x_ref[pl.ds(ci, 1), lanes].astype(jnp.float32)
        o_ref[:, lanes] = (acc + b).astype(o_ref.dtype)

    def kernel(x_ref, w_ref, b_ref, o_ref):
        # x_ref: (C_in, tile_l), w_ref: (C_out, C_in), b_ref: (C_out, 1)
        w = w_ref[...].astype(jnp.float32)
        b = b_ref[...].astype(jnp.float32)

        def body(s, carry):
            lo = pl.multiple_of(s * strip, strip)
            compute_strip(x_ref, w, b, o_ref, lo, strip)
            return carry

        lax.fori_loop(0, n_full, body, 0)
        if rem > 0:  # static tail strip (static, 128-aligned start offset)
            compute_strip(x_ref, w, b, o_ref, n_full * strip, rem)

    return kernel


def out_conv(x_nchw, weight, bias, *, tile_l=None):
    """1x1 Conv2d forward, matching nn.Conv2d(in_channels, out_channels, 1).

    x_nchw : (N, C_in, H, W)
    weight : (C_out, C_in, 1, 1)   -- PyTorch Conv2d weight layout
    bias   : (C_out,)
    returns: (N, C_out, H, W), dtype of x.
    """
    N, C_in, H, W = x_nchw.shape
    C_out = weight.shape[0]
    L = H * W

    dtype_bytes = jnp.dtype(x_nchw.dtype).itemsize
    bytes_per_lane = (C_in + C_out) * dtype_bytes
    vmem_budget = _vmem_budget_bytes()

    # ---- lane-axis (H*W) tile size ------------------------------------------
    if tile_l is None:
        # ~16 MiB of in+out DMA per grid step (so the 0.35us/step overhead is
        # negligible even at v7x's 3.2 TB/s), capped so the double-buffered
        # in+out tiles stay within ~80% of the VMEM budget.
        target = (16 * _MIB) // bytes_per_lane
        cap = int(vmem_budget * 0.4) // bytes_per_lane
        tile_l = max(_STRIP, min(target, cap))
        tile_l = (tile_l // _STRIP) * _STRIP          # multiple of 512 (and 128)
    else:
        tile_l = max(128, ((tile_l + 127) // 128) * 128)  # honor (8,128) rule

    if tile_l >= L:
        tile_l = L                                    # single lane tile (full dim)
        if N == 1 and L > 1024:
            # v7x: keep >=2 'parallel' grid steps so both TensorCores get work.
            tile_l = ((pl.cdiv(L, 2) + _STRIP - 1) // _STRIP) * _STRIP

    num_lane_tiles = pl.cdiv(L, tile_l)               # ragged last block is masked

    # ---- free-layout views (no NCHW<->NHWC transposes, no padding copies) ----
    x_mat = x_nchw.reshape(N, C_in, L)                # NCHW -> (N, C_in, H*W)
    w_mat = weight.reshape(C_out, C_in)               # (C_out, C_in)
    b_mat = bias.reshape(C_out, 1)                    # (C_out, 1), lane-broadcast

    # MXU whenever the unrolled VPU loop would become VALU-bound.
    use_mxu = (C_out >= 8) or (C_in >= 32)
    kernel = _make_kernel(C_in, C_out, tile_l, use_mxu)

    cost = pl.CostEstimate(
        flops=2 * N * C_out * C_in * L,
        transcendentals=0,
        bytes_accessed=N * (C_in + C_out) * L * dtype_bytes
        + (C_out * C_in + C_out) * jnp.dtype(weight.dtype).itemsize,
    )

    out = pl.pallas_call(
        kernel,
        out_shape=jax.ShapeDtypeStruct((N, C_out, L), x_nchw.dtype),
        grid_spec=pltpu.PrefetchScalarGridSpec(
            num_scalar_prefetch=0,
            grid=(N, num_lane_tiles),
            in_specs=[
                # batch dim squeezed out; kernel sees (C_in, tile_l)
                pl.BlockSpec((None, C_in, tile_l), lambda n, l: (n, 0, l)),
                pl.BlockSpec((C_out, C_in), lambda n, l: (0, 0)),
                pl.BlockSpec((C_out, 1), lambda n, l: (0, 0)),
            ],
            out_specs=pl.BlockSpec((None, C_out, tile_l), lambda n, l: (n, 0, l)),
        ),
        compiler_params=pltpu.CompilerParams(
            dimension_semantics=("parallel", "parallel"),
            vmem_limit_bytes=vmem_budget),
        cost_estimate=cost,
    )(x_mat, w_mat, b_mat)

    return out.reshape(N, C_out, H, W)                # free reshape


if __name__ == "__main__":
    key = jax.random.PRNGKey(0)
    kx, kw, kb = jax.random.split(key, 3)

    N, C_in, C_out, H, W = 2, 4, 3, 16, 16

    x = jax.random.normal(kx, (N, C_in, H, W), dtype=jnp.float32)

    # Deterministic param init (shapes match nn.Conv2d(in, out, kernel_size=1)).
    fan_in = C_in * 1 * 1
    bound = 1.0 / (fan_in ** 0.5)
    weight = jax.random.uniform(kw, (C_out, C_in, 1, 1), dtype=jnp.float32,
                                minval=-bound, maxval=bound)
    bias = jax.random.uniform(kb, (C_out,), dtype=jnp.float32,
                              minval=-bound, maxval=bound)

    y = out_conv(x, weight, bias)
    y = jax.block_until_ready(y)

    # reference check (plain JAX einsum over channels)
    y_ref = jnp.einsum("nchw,oc->nohw", x, weight.reshape(C_out, C_in)) \
        + bias.reshape(1, C_out, 1, 1)
    assert y.shape == (N, C_out, H, W)
    assert jnp.allclose(y, y_ref, atol=1e-5, rtol=1e-5)

    print("KERNEL_OK")
</pallas_src>

<mosaic_0001>
module attributes {stable_mosaic.version = 11 : i64} {
  func.func @kernel(%arg0: i32, %arg1: i32, %arg2: memref<1x4x256xf32, #tpu.memory_space<vmem>>, %arg3: memref<3x4xf32, #tpu.memory_space<vmem>>, %arg4: memref<3x1xf32, #tpu.memory_space<vmem>>, %arg5: memref<1x3x256xf32, #tpu.memory_space<vmem>>) attributes {dimension_semantics = [#tpu.dimension_semantics<parallel>, #tpu.dimension_semantics<parallel>], iteration_bounds = array<i64: 2, 1>, scalar_prefetch = 0 : i64, scratch_operands = 0 : i64, tpu.core_type = #tpu.core_type<tc>, window_params = [{transform_indices = @transform_0, window_bounds = array<i64: 1, 4, 256>}, {pipeline_mode = #tpu.pipeline_mode<synchronous>, transform_indices = @transform_1, window_bounds = array<i64: 3, 4>}, {pipeline_mode = #tpu.pipeline_mode<synchronous>, transform_indices = @transform_2, window_bounds = array<i64: 3, 1>}, {transform_indices = @transform_3, window_bounds = array<i64: 1, 3, 256>}]} {
    %c0 = arith.constant 0 : index
    %c0_0 = arith.constant 0 : index
    %0 = vector.load %arg3[%c0, %c0_0] : memref<3x4xf32, #tpu.memory_space<vmem>>, vector<3x4xf32>
    %c0_1 = arith.constant 0 : index
    %c0_2 = arith.constant 0 : index
    %1 = vector.load %arg4[%c0_1, %c0_2] : memref<3x1xf32, #tpu.memory_space<vmem>>, vector<3x1xf32>
    %c0_i32 = arith.constant 0 : i32
    %c256_i32 = arith.constant 256 : i32
    %2 = arith.muli %c0_i32, %c256_i32 : i32
    %3 = tpu.assume_multiple %2, 256 : i32
    %4 = vector.extract_strided_slice %0 {offsets = [0, 0], sizes = [3, 1], strides = [1, 1]} : vector<3x4xf32> to vector<3x1xf32>
    %c0_3 = arith.constant 0 : index
    %c0_4 = arith.constant 0 : index
    %5 = arith.index_cast %3 : i32 to index
    %6 = vector.load %arg2[%c0_3, %c0_4, %5] : memref<1x4x256xf32, #tpu.memory_space<vmem>>, vector<1x1x256xf32>
    %7 = vector.shape_cast %6 : vector<1x1x256xf32> to vector<1x256xf32>
    %8 = vector.broadcast %4 : vector<3x1xf32> to vector<3x256xf32>
    %9 = vector.broadcast %7 : vector<1x256xf32> to vector<3x256xf32>
    %10 = arith.mulf %8, %9 : vector<3x256xf32>
    %11 = vector.extract_strided_slice %0 {offsets = [0, 1], sizes = [3, 1], strides = [1, 1]} : vector<3x4xf32> to vector<3x1xf32>
    %c0_5 = arith.constant 0 : index
    %c1 = arith.constant 1 : index
    %12 = arith.index_cast %3 : i32 to index
    %13 = vector.load %arg2[%c0_5, %c1, %12] : memref<1x4x256xf32, #tpu.memory_space<vmem>>, vector<1x1x256xf32>
    %14 = vector.shape_cast %13 : vector<1x1x256xf32> to vector<1x256xf32>
    %15 = vector.broadcast %11 : vector<3x1xf32> to vector<3x256xf32>
    %16 = vector.broadcast %14 : vector<1x256xf32> to vector<3x256xf32>
    %17 = arith.mulf %15, %16 : vector<3x256xf32>
    %18 = arith.addf %10, %17 : vector<3x256xf32>
    %19 = vector.extract_strided_slice %0 {offsets = [0, 2], sizes = [3, 1], strides = [1, 1]} : vector<3x4xf32> to vector<3x1xf32>
    %c0_6 = arith.constant 0 : index
    %c2 = arith.constant 2 : index
    %20 = arith.index_cast %3 : i32 to index
    %21 = vector.load %arg2[%c0_6, %c2, %20] : memref<1x4x256xf32, #tpu.memory_space<vmem>>, vector<1x1x256xf32>
    %22 = vector.shape_cast %21 : vector<1x1x256xf32> to vector<1x256xf32>
    %23 = vector.broadcast %19 : vector<3x1xf32> to vector<3x256xf32>
    %24 = vector.broadcast %22 : vector<1x256xf32> to vector<3x256xf32>
    %25 = arith.mulf %23, %24 : vector<3x256xf32>
    %26 = arith.addf %18, %25 : vector<3x256xf32>
    %27 = vector.extract_strided_slice %0 {offsets = [0, 3], sizes = [3, 1], strides = [1, 1]} : vector<3x4xf32> to vector<3x1xf32>
    %c0_7 = arith.constant 0 : index
    %c3 = arith.constant 3 : index
    %28 = arith.index_cast %3 : i32 to index
    %29 = vector.load %arg2[%c0_7, %c3, %28] : memref<1x4x256xf32, #tpu.memory_space<vmem>>, vector<1x1x256xf32>
    %30 = vector.shape_cast %29 : vector<1x1x256xf32> to vector<1x256xf32>
    %31 = vector.broadcast %27 : vector<3x1xf32> to vector<3x256xf32>
    %32 = vector.broadcast %30 : vector<1x256xf32> to vector<3x256xf32>
    %33 = arith.mulf %31, %32 : vector<3x256xf32>
    %34 = arith.addf %26, %33 : vector<3x256xf32>
    %35 = vector.broadcast %1 : vector<3x1xf32> to vector<3x256xf32>
    %36 = arith.addf %34, %35 : vector<3x256xf32>
    %c0_8 = arith.constant 0 : index
    %c0_9 = arith.constant 0 : index
    %37 = arith.index_cast %3 : i32 to index
    %38 = vector.load %arg5[%c0_8, %c0_9, %37] : memref<1x3x256xf32, #tpu.memory_space<vmem>>, vector<1x3x256xf32>
    %39 = vector.shape_cast %38 : vector<1x3x256xf32> to vector<3x256xf32>
    %40 = vector.shape_cast %36 : vector<3x256xf32> to vector<1x3x256xf32>
    tpu.vector_store %arg5[%c0_8, %c0_9, %37], %40 {strides = array<i32>} : memref<1x3x256xf32, #tpu.memory_space<vmem>>, vector<1x3x256xf32>,
    %c1_i32 = arith.constant 1 : i32
    return
  }
  func.func @transform_0(%arg0: i32, %arg1: i32) -> (i32, i32, i32) {
    %c0_i32 = arith.constant 0 : i32
    %c0_i32_0 = arith.constant 0 : i32
    return %arg0, %c0_i32, %arg1 : i32, i32, i32
  }
  func.func @transform_1(%arg0: i32, %arg1: i32) -> (i32, i32) {
    %c0_i32 = arith.constant 0 : i32
    %c0_i32_0 = arith.constant 0 : i32
    %c0_i32_1 = arith.constant 0 : i32
    return %c0_i32, %c0_i32_0 : i32, i32
  }
  func.func @transform_2(%arg0: i32, %arg1: i32) -> (i32, i32) {
    %c0_i32 = arith.constant 0 : i32
    %c0_i32_0 = arith.constant 0 : i32
    %c0_i32_1 = arith.constant 0 : i32
    return %c0_i32, %c0_i32_0 : i32, i32
  }
  func.func @transform_3(%arg0: i32, %arg1: i32) -> (i32, i32, i32) {
    %c0_i32 = arith.constant 0 : i32
    %c0_i32_0 = arith.constant 0 : i32
    return %arg0, %c0_i32, %arg1 : i32, i32, i32
  }
}

</mosaic_0001>

<llo_original>
// kernel: tpu_custom_call.1
$region0: #{tpu_custom_call.1}
  #allocation0 [shape = 'u32[]', space=smem, size = 0x4, offset = 0x4, fixed_abs, tag = 'smem constant byte address 0x4 - core index']
  #allocation1 [shape = 'u32[72,128]{1,0:T(1,128)}', space=vmem, size = 0x9000, scoped, tag = 'internal scratch']
  %s0 = inlined_call_operand.hbm [shape: f32[2,4,256], index: 0, kind: input, shape index: {}]
  %s1 = inlined_call_operand.vmem [shape: f32[3,4], index: 1, kind: input, shape index: {}]
  %s2 = inlined_call_operand.vmem [shape: f32[3,1], index: 2, kind: input, shape index: {}]
  %s3 = inlined_call_operand.vmem [shape: f32[2,3,256], index: 3, kind: output, shape index: {}]
  %s4 = sld [smem:[#allocation0]]
  $region49: #{tpu_custom_call.1} parent=0
    _
  %s6 = ssub.s32 1, %s4
  %s7 = scalar_select 0, %s6, %s4
  $region1: #{tpu_custom_call.1} parent=0
    #allocation2 [shape = 'u8[8192]{0}', space=vmem, size = 0x2000, scoped, tag = 'input window, operand 0']
    #allocation3 [shape = 's32[2]{0}', space=sflag, size = 0x8, scoped, tag = 'scoped memory for tpu_custom_call.1']
    %8 = vsyncpa [#allocation3], 0
    %s9 = scalar_lea.sflag [#allocation3], 1
    %10 = vsyncpa %s9, 0
    loop: start=0, step=1, limit=4
    $region2: #{tpu_custom_call.1} parent=1 // loop_pre_header
      _
    $region3: #{tpu_custom_call.1} parent=1 // loop_header
      %s12 = sphi 0, %s16
      %p13 = scmp.ge.s32.totalorder %s12, 4
      %s19 = sphi 0, %s31
      %s20 = sphi 0, %s27
      %s21 = sphi 0, %s19
      %s22 = sphi 0, %s20
      %s23 = sphi 0, %s21
      %s24 = sphi 0, %s22
      %s36 = sphi 0, %s38
      %s39 = sphi 0, %s36
      %s40 = sphi 0, %s39
      %s56 = sphi 0, %s40
      %s60 = sphi 0, %s60
      %s62 = sphi 0, %s60
      %s63 = sphi 0, %s62
      %s77 = sphi 0, %s63
      %s81 = sphi 0, %s81
      %s83 = sphi 0, %s81
      %s84 = sphi 0, %s83
      %s98 = sphi 0, %s84
      %s106 = sphi 0, %s108
      %s109 = sphi 0, %s106
      %s110 = sphi 0, %s109
      %s126 = sphi 0, %s110
    $region4: #{tpu_custom_call.1} parent=1 // loop_header_branch
      %15 = sbr.rel (%p13) target = $region8
    $region5: #{tpu_custom_call.1} parent=1 // loop_body
      %s17 = ssub.s32 %s12, 1
      %s18 = ssub.s32 %s12, 2
      %s25 = sadd.s32 1, %s20
      %p26 = scmp.ge.s32.totalorder %s25, 1
      %s27 = scalar_select %p26, 0, %s25
      %s28 = sadd.s32 1, %s19
      %s29 = scalar_select %p26, %s28, %s19
      %p30 = scmp.ge.s32.totalorder %s29, 2
      %s31 = scalar_select %p30, 0, %s29
      %s32 = ssub.s32 %s19, %s31
      %s33 = ssub.s32 %s20, %s27
      %s34 = sor.u32 %s32, %s33
      %p35 = scmp.eq.s32.totalorder %s34, 0
      %s37 = sadd.s32 %s36, 1
      %s38 = scalar_select %p35, %s36, %s37
      %p41 = pneg %p35
      %p42 = scmp.eq.s32.totalorder %s12, 1
      %p43 = por %p41, %p42
      %p44 = scmp.ne.s32.totalorder %s36, %s39
      %p45 = scmp.eq.s32.totalorder %s12, 0
      %p46 = por %p44, %p45
      %p47 = scmp.ne.s32.totalorder %s36, %s39
      %p48 = scmp.eq.s32.totalorder %s17, 1
      %p49 = por %p47, %p48
      %p50 = scmp.ne.s32.totalorder %s39, %s40
      %p51 = scmp.eq.s32.totalorder %s17, 0
      %p52 = por %p50, %p51
      %p53 = scmp.ne.s32.totalorder %s39, %s40
      %p54 = scmp.eq.s32.totalorder %s18, 1
      %p55 = por %p53, %p54
      %p57 = scmp.ne.s32.totalorder %s40, %s56
      %p58 = scmp.eq.s32.totalorder %s18, 0
      %p59 = por %p57, %p58
      %s61 = sadd.s32 %s60, 1
      %p64 = scmp.eq.s32.totalorder %s12, 1
      %p65 = scmp.ne.s32.totalorder %s60, %s62
      %p66 = scmp.eq.s32.totalorder %s12, 0
      %p67 = por %p65, %p66
      %p68 = scmp.ne.s32.totalorder %s60, %s62
      %p69 = scmp.eq.s32.totalorder %s17, 1
      %p70 = por %p68, %p69
      %p71 = scmp.ne.s32.totalorder %s62, %s63
      %p72 = scmp.eq.s32.totalorder %s17, 0
      %p73 = por %p71, %p72
      %p74 = scmp.ne.s32.totalorder %s62, %s63
      %p75 = scmp.eq.s32.totalorder %s18, 1
      %p76 = por %p74, %p75
      %p78 = scmp.ne.s32.totalorder %s63, %s77
      %p79 = scmp.eq.s32.totalorder %s18, 0
      %p80 = por %p78, %p79
      %s82 = sadd.s32 %s81, 1
      %p85 = scmp.eq.s32.totalorder %s12, 1
      %p86 = scmp.ne.s32.totalorder %s81, %s83
      %p87 = scmp.eq.s32.totalorder %s12, 0
      %p88 = por %p86, %p87
      %p89 = scmp.ne.s32.totalorder %s81, %s83
      %p90 = scmp.eq.s32.totalorder %s17, 1
      %p91 = por %p89, %p90
      %p92 = scmp.ne.s32.totalorder %s83, %s84
      %p93 = scmp.eq.s32.totalorder %s17, 0
      %p94 = por %p92, %p93
      %p95 = scmp.ne.s32.totalorder %s83, %s84
      %p96 = scmp.eq.s32.totalorder %s18, 1
      %p97 = por %p95, %p96
      %p99 = scmp.ne.s32.totalorder %s84, %s98
      %p100 = scmp.eq.s32.totalorder %s18, 0
      %p101 = por %p99, %p100
      %s102 = ssub.s32 %s19, %s31
      %s103 = ssub.s32 %s20, %s27
      %s104 = sor.u32 %s102, %s103
      %p105 = scmp.eq.s32.totalorder %s104, 0
      %s107 = sadd.s32 %s106, 1
      %s108 = scalar_select %p105, %s106, %s107
      %p111 = pneg %p105
      %p112 = scmp.eq.s32.totalorder %s12, 1
      %p113 = por %p111, %p112
      %p114 = scmp.ne.s32.totalorder %s106, %s109
      %p115 = scmp.eq.s32.totalorder %s12, 0
      %p116 = por %p114, %p115
      %p117 = scmp.ne.s32.totalorder %s106, %s109
      %p118 = scmp.eq.s32.totalorder %s17, 1
      %p119 = por %p117, %p118
      %p120 = scmp.ne.s32.totalorder %s109, %s110
      %p121 = scmp.eq.s32.totalorder %s17, 0
      %p122 = por %p120, %p121
      %p123 = scmp.ne.s32.totalorder %s109, %s110
      %p124 = scmp.eq.s32.totalorder %s18, 1
      %p125 = por %p123, %p124
      %p127 = scmp.ne.s32.totalorder %s110, %s126
      %p128 = scmp.eq.s32.totalorder %s18, 0
      %p129 = por %p127, %p128
      %p130 = scmp.le.s32.totalorder 1, %s12
      %p131 = scmp.lt.s32.totalorder %s12, 3
      %p132 = pnand %p130, %p131
      %p133 = pneg %p132
      // Predicated region
      $region9: #{tpu_custom_call.1} parent=5 // pred_check
        _
      $region10: #{tpu_custom_call.1} parent=5 // pred_check_branch
        %135 = sbr.rel (%p132) target = $region12
      $region11: #{tpu_custom_call.1} parent=5 // pred_region
        %s136 = ssub.s32 %s12, 1
        // Predicated region
        $region13: #{tpu_custom_call.1} parent=11 // pred_check
          %p137 = pneg %p73
        $region14: #{tpu_custom_call.1} parent=11 // pred_check_branch
          %139 = sbr.rel (%p137) target = $region16
        $region15: #{tpu_custom_call.1} parent=11 // pred_region
          _
        $region16: #{tpu_custom_call.1} parent=11 // pred_fallthru
          _
        // Predicated region
        $region17: #{tpu_custom_call.1} parent=11 // pred_check
          %p140 = pneg %p94
        $region18: #{tpu_custom_call.1} parent=11 // pred_check_branch
          %142 = sbr.rel (%p140) target = $region20
        $region19: #{tpu_custom_call.1} parent=11 // pred_region
          _
        $region20: #{tpu_custom_call.1} parent=11 // pred_fallthru
          _
      $region12: #{tpu_custom_call.1} parent=5 // pred_fallthru
        _
      %p143 = scmp.lt.s32.totalorder %s12, 2
      // Predicated region
      $region21: #{tpu_custom_call.1} parent=5 // pred_check
        %p144 = pneg %p143
      $region22: #{tpu_custom_call.1} parent=5 // pred_check_branch
        %146 = sbr.rel (%p144) target = $region24
      $region23: #{tpu_custom_call.1} parent=5 // pred_region
        // Predicated region
        $region25: #{tpu_custom_call.1} parent=23 // pred_check
          %p147 = pneg %p46
        $region26: #{tpu_custom_call.1} parent=23 // pred_check_branch
          %149 = sbr.rel (%p147) target = $region28
        $region27: #{tpu_custom_call.1} parent=23 // pred_region
          %s150 = sand.u32 %s36, 1
          %s151 = scalar_lea.sflag [#allocation3], %s150
          %s152 = sand.u32 %s36, 1
          %s153 = smul.addr %s152, 8
          %s154 = scalar_lea.vmem [#allocation2], %s153
          %s155 = smul.u32 2, %s20
          %157 = vsyncadd %s151, 0
          %s158 = smul.addr %s19, 2
          %s159 = sadd.s32 %s155, %s158
          %s160 = smul.addr %s159, 4
          %s161 = scalar_lea.hbm %s0, %s160
          %s163 = sshll.u32 %s161, 4
          %s164 = int_to_ptr.hbm [resolvable:$true] %s163
          %s165 = sshll.u32 %s154, 4
          %s166 = int_to_ptr.vmem [resolvable:$true] %s165
          %168 = dma.hbm_to_vmem [thread:$0]  %s164, 128, %s166, %s151
        $region28: #{tpu_custom_call.1} parent=23 // pred_fallthru
          _
      $region24: #{tpu_custom_call.1} parent=5 // pred_fallthru
        _
      %p169 = scmp.le.s32.totalorder 1, %s12
      %p170 = scmp.lt.s32.totalorder %s12, 3
      %p171 = pnand %p169, %p170
      %p172 = pneg %p171
      // Predicated region
      $region29: #{tpu_custom_call.1} parent=5 // pred_check
        _
      $region30: #{tpu_custom_call.1} parent=5 // pred_check_branch
        %174 = sbr.rel (%p171) target = $region32
      $region31: #{tpu_custom_call.1} parent=5 // pred_region
        %s175 = ssub.s32 %s12, 1
        %s176 = sand.u32 %s39, 1
        %s177 = scalar_lea.sflag [#allocation3], %s176
        %s178 = sand.u32 %s39, 1
        %s179 = smul.addr %s178, 8
        %s180 = scalar_lea.vmem [#allocation2], %s179
        // Predicated region
        $region33: #{tpu_custom_call.1} parent=31 // pred_check
          %p181 = pneg %p52
        $region34: #{tpu_custom_call.1} parent=31 // pred_check_branch
          %183 = sbr.rel (%p181) target = $region36
        $region35: #{tpu_custom_call.1} parent=31 // pred_region
          %185 = dma.done %s177, 128
        $region36: #{tpu_custom_call.1} parent=31 // pred_fallthru
          _
        %s186 = sand.u32 %s39, 1
        %s187 = scalar_lea.sflag [#allocation3], %s186
        %s188 = sand.u32 %s39, 1
        %s189 = smul.addr %s188, 8
        %s190 = scalar_lea.vmem [#allocation2], %s189
        %p191 = pneg %p52
        %p192 = pneg %p49
        %p193 = pneg %p73
        %p194 = pneg %p70
        %p195 = pneg %p94
        %p196 = pneg %p91
        %p197 = pneg %p122
        %p198 = pneg %p119
        %s199 = smul.u32 2, %s22
        %p200 = scmp.lt.s32.totalorder %s21, 1
        %s201 = scalar_select %p200, %s21, 1
        %p202 = scmp.lt.s32.totalorder %s199, 1
        %s203 = scalar_select %p202, %s199, 1
        %s204 = smul.addr %s201, 2
        %s205 = sadd.s32 %s203, %s204
        %s206 = smul.addr %s205, 4
        %s207 = scalar_lea.vmem %s3, %s206
        %s208 = smul.u32 2, %s22
        %s209 = smul.u32 2, %s22
        %p210 = scmp.lt.s32.totalorder %s21, 1
        %s211 = scalar_select %p210, %s21, 1
        %p212 = scmp.lt.s32.totalorder %s209, 1
        %s213 = scalar_select %p212, %s209, 1
        %s214 = smul.addr %s211, 2
        %s215 = sadd.s32 %s213, %s214
        %s216 = smul.addr %s215, 4
        %s217 = scalar_lea.vmem %s3, %s216
        %s218 = smul.u32 2, %s22
        %v219 = vld [vmem:[%s1] sm:$0x7]
        %v220 = vld [vmem:[%s2] sm:$0x7]
        %v221 = vld [vmem:[%s180] ss:$4 sm:$0x3]
        %223 = vset.pattern.permute.xlu0 0
        %224 = vperm.xlu0 %223, %v219
        %v225 = vpop.permute.xlu0 %224
        %v228 = vperm.slane %v221, 0
        %v229 = vperm.slane %v221, 1
        %v232 = vmul.f32 %v225, %v228
        %v233 = vmul.f32 %v225, %v229
        %s234 = scalar_lea.vmem %s180, 1 [#allocation2]
        %v235 = vld [vmem:[%s234] ss:$4 sm:$0x3]
        %236 = vset.pattern.permute.xlu0 1
        %237 = vperm.xlu0 %236, %v219
        %v238 = vpop.permute.xlu0 %237
        %v241 = vperm.slane %v235, 0
        %v242 = vperm.slane %v235, 1
        %v245 = vmul.f32 %v238, %v241
        %v246 = vmul.f32 %v238, %v242
        %v247 = vadd.f32 %v232, %v245
        %v248 = vadd.f32 %v233, %v246
        %s249 = scalar_lea.vmem %s180, 2 [#allocation2]
        %v250 = vld [vmem:[%s249] ss:$4 sm:$0x3]
        %251 = vset.pattern.permute.xlu0 2
        %252 = vperm.xlu0 %251, %v219
        %v253 = vpop.permute.xlu0 %252
        %v256 = vperm.slane %v250, 0
        %v257 = vperm.slane %v250, 1
        %v260 = vmul.f32 %v253, %v256
        %v261 = vmul.f32 %v253, %v257
        %v262 = vadd.f32 %v247, %v260
        %v263 = vadd.f32 %v248, %v261
        %s264 = scalar_lea.vmem %s180, 3 [#allocation2]
        %v265 = vld [vmem:[%s264] ss:$4 sm:$0x3]
        %266 = vset.pattern.permute.xlu0 3
        %267 = vperm.xlu0 %266, %v219
        %v268 = vpop.permute.xlu0 %267
        %v271 = vperm.slane %v265, 0
        %v272 = vperm.slane %v265, 1
        %v275 = vmul.f32 %v268, %v271
        %v276 = vmul.f32 %v268, %v272
        %v277 = vadd.f32 %v262, %v275
        %v278 = vadd.f32 %v263, %v276
        %280 = vset.pattern.permute.xlu0 0
        %281 = vperm.xlu0 %280, %v220
        %v282 = vpop.permute.xlu0 %281
        %v284 = vadd.f32 %v277, %v282
        %v285 = vadd.f32 %v278, %v282
        %v288 = vrot.slane %v285, 4
        %vm289 = vcmask 1043456
        %v290 = vsel %vm289, %v284, %v288
        %292 = vst [vmem:[%s217] sm:$0x77] %v290
        %s293 = smul.u32 2, %s22
        %p294 = scmp.lt.s32.totalorder %s21, 1
        %s295 = scalar_select %p294, %s21, 1
        %p296 = scmp.lt.s32.totalorder %s293, 1
        %s297 = scalar_select %p296, %s293, 1
        %s298 = smul.addr %s295, 2
        %s299 = sadd.s32 %s297, %s298
        %s300 = smul.addr %s299, 4
        %s301 = scalar_lea.vmem %s3, %s300
        // Predicated region
        $region37: #{tpu_custom_call.1} parent=31 // pred_check
          %p302 = pneg %p119
        $region38: #{tpu_custom_call.1} parent=31 // pred_check_branch
          %304 = sbr.rel (%p302) target = $region40
        $region39: #{tpu_custom_call.1} parent=31 // pred_region
          %s305 = smul.u32 2, %s22
        $region40: #{tpu_custom_call.1} parent=31 // pred_fallthru
          _
      $region32: #{tpu_custom_call.1} parent=5 // pred_fallthru
        _
      %p306 = scmp.le.s32.totalorder 2, %s12
      // Predicated region
      $region41: #{tpu_custom_call.1} parent=5 // pred_check
        %p307 = pneg %p306
      $region42: #{tpu_custom_call.1} parent=5 // pred_check_branch
        %309 = sbr.rel (%p307) target = $region44
      $region43: #{tpu_custom_call.1} parent=5 // pred_region
        %s310 = ssub.s32 %s12, 2
        // Predicated region
        $region45: #{tpu_custom_call.1} parent=43 // pred_check
          %p311 = pneg %p125
        $region46: #{tpu_custom_call.1} parent=43 // pred_check_branch
          %313 = sbr.rel (%p311) target = $region48
        $region47: #{tpu_custom_call.1} parent=43 // pred_region
          %s314 = smul.u32 2, %s24
          %p315 = scmp.lt.s32.totalorder %s23, 1
          %s316 = scalar_select %p315, %s23, 1
          %p317 = scmp.lt.s32.totalorder %s314, 1
          %s318 = scalar_select %p317, %s314, 1
          %s319 = smul.addr %s316, 2
          %s320 = sadd.s32 %s318, %s319
          %s321 = smul.addr %s320, 4
          %s322 = scalar_lea.vmem %s3, %s321
        $region48: #{tpu_custom_call.1} parent=43 // pred_fallthru
          _
      $region44: #{tpu_custom_call.1} parent=5 // pred_fallthru
        _
    $region6: #{tpu_custom_call.1} parent=1 // loop_footer
      %s16 = sadd.s32 1, %s12
    $region7: #{tpu_custom_call.1} parent=1 // loop_footer_branch
      %11 = sbr.rel target = $region3
    $region8: #{tpu_custom_call.1} parent=1 // loop_exit
      _
    %323 = vsyncpa [#allocation3], 1
    %s324 = scalar_lea.sflag [#allocation3], 1
    %325 = vsyncpa %s324, 1

</llo_original>
